<compile_context>
chip_gen: v6e
topology: v6e:2x2x1
jax: 0.10.0
libtpu: 0.0.40
codegen_flags: <defaults>
</compile_context>

<pallas_src>
import functools

import jax
import jax.numpy as jnp
from jax.experimental import pallas as pl
from jax.experimental.pallas import tpu as pltpu


def _round_up(x, m):
    return ((x + m - 1) // m) * m


# ----------------------------------------------------------------------------
# Kernels
# ----------------------------------------------------------------------------
def _single_shot_kernel(x_ref, w_ref, b_ref, o_ref):
    """Whole problem in one shot: (B, F) @ (F, O) + bias -> (B, O)."""
    o_ref[...] = (
        jnp.dot(x_ref[...], w_ref[...], preferred_element_type=jnp.float32)
        + b_ref[...]
    ).astype(o_ref.dtype)


def _packed_reduce_kernel(x_ref, w_ref, o_ref):
    """Lane-dense K-tiled reduction.

    x_ref: (8B, Gt)   permuted activations (lane-dense along G)
    w_ref: (Gt, 8O)   packed weight rows (lane-dense, 128 lanes for O=16)
    o_ref: (8B, 8O)   f32 partial accumulator, resident across the K axis
    """
    k = pl.program_id(1)

    @pl.when(k == 0)
    def _():
        o_ref[...] = jnp.zeros_like(o_ref)

    o_ref[...] += jnp.dot(
        x_ref[...], w_ref[...], preferred_element_type=jnp.float32
    )


# ----------------------------------------------------------------------------
# Budgets (generation aware)
# ----------------------------------------------------------------------------
def _budgets():
    """Returns (tile_budget_bytes, vmem_limit_bytes, single_shot_budget_bytes)."""
    try:
        kind = jax.devices()[0].device_kind.lower()
    except Exception:  # pragma: no cover
        kind = ""
    if "7x" in kind or "v7" in kind:
        # v7x: 64 MiB physical VMEM per TensorCore -> tighter budgets.
        return 14 * 2**20, 40 * 2**20, 6 * 2**20
    # v5e / v6e: 128 MiB physical VMEM.
    return 24 * 2**20, 56 * 2**20, 10 * 2**20


# ----------------------------------------------------------------------------
# Wrapper
# ----------------------------------------------------------------------------
@functools.partial(
    jax.jit, static_argnames=("single_shot_max_bytes", "tile_budget_bytes")
)
def collapse_mlp_output(attn_data, weight_t, bias, *,
                        single_shot_max_bytes=None, tile_budget_bytes=None):
    """attn_data: (B, L, H)            (any float dtype)
    weight_t:  (F, O)  float32         (F = L * H; PyTorch weight is (O, F))
    bias:      (O,)    float32
    returns:   (B, O)  attn_data.dtype
    """
    B = attn_data.shape[0]
    x2d = attn_data.reshape(B, -1)                 # flatten == torch .view()
    F, O = weight_t.shape
    assert x2d.shape[1] == F
    out_dtype = attn_data.dtype

    tile_budget, vmem_limit, single_budget = _budgets()
    if single_shot_max_bytes is not None:
        single_budget = single_shot_max_bytes
    if tile_budget_bytes is not None:
        tile_budget = tile_budget_bytes

    # ---- bytes-based single-shot cutoff (padded VMEM footprint) ------------
    w_itm = weight_t.dtype.itemsize
    x_itm = x2d.dtype.itemsize
    w_vmem = _round_up(F, 8) * _round_up(O, 128) * w_itm      # lane-padded
    x_vmem = _round_up(B, 8) * _round_up(F, 128) * x_itm      # sublane-padded
    if w_vmem + x_vmem <= single_budget:
        # One DMA, no grid, no scratch: optimal for the production shape.
        vmem = pl.BlockSpec(memory_space=pltpu.MemorySpace.VMEM)
        return pl.pallas_call(
            _single_shot_kernel,
            out_shape=jax.ShapeDtypeStruct((B, O), out_dtype),
            in_specs=[vmem, vmem, vmem],
            out_specs=vmem,
            compiler_params=pltpu.CompilerParams(vmem_limit_bytes=vmem_limit),
        )(x2d, weight_t, bias.reshape(1, O))

    # ---- large-F path: lane-dense packed K-tiled reduction ------------------
    # Pack 8 weight rows per VMEM row: (F, O) -> (G, 8*O) (a free reshape).
    # Permute x once so the kernel is a plain dense matmul over G.
    G = pl.cdiv(F, 8)
    F8 = G * 8
    if F8 != F:
        x2d = jnp.pad(x2d, ((0, 0), (0, F8 - F)))
        weight_t = jnp.pad(weight_t, ((0, F8 - F), (0, 0)))

    B8 = B * 8
    O8 = 8 * O
    w_packed = weight_t.reshape(G, O8)                            # free view
    x_perm = x2d.reshape(B, G, 8).transpose(0, 2, 1).reshape(B8, G)

    # Double-buffered bytes per G-row (both operands, with lane/sublane pad).
    per_row = 2 * (_round_up(O8, 128) * w_itm + _round_up(B8, 8) * x_itm)
    gt_max = max(128, (tile_budget // per_row) // 128 * 128)

    # Pick a K tile (in G rows): prefer an exact, 128-aligned divisor of G so
    # the weight is never copied; otherwise zero-pad (rare, ragged F only).
    cap = max(128, min(gt_max, _round_up(G, 128)))
    gt = 0
    if G % 128 == 0:
        g128 = G // 128
        d = cap // 128
        while d >= 1:
            if g128 % d == 0:
                gt = d * 128
                break
            d -= 1
    if gt == 0 or gt * 2 < cap:
        # TODO(synk): ragged / awkward G -> zero-pad (copies the weight once).
        gt = cap
    t_total = pl.cdiv(G, gt)
    nsplit = 2 if (t_total >= 2 and t_total % 2 == 0) else 1      # v7x: 2 TCs
    nk = t_total // nsplit
    Gp = t_total * gt
    if Gp != G:
        x_perm = jnp.pad(x_perm, ((0, 0), (0, Gp - G)))
        w_packed = jnp.pad(w_packed, ((0, Gp - G), (0, 0)))

    partials = pl.pallas_call(
        _packed_reduce_kernel,
        out_shape=jax.ShapeDtypeStruct((nsplit, B8, O8), jnp.float32),
        grid_spec=pl.GridSpec(
            grid=(nsplit, nk),
            in_specs=[
                pl.BlockSpec((B8, gt), lambda c, k: (0, c * nk + k)),
                pl.BlockSpec((gt, O8), lambda c, k: (c * nk + k, 0)),
            ],
            out_specs=pl.BlockSpec((None, B8, O8), lambda c, k: (c, 0, 0)),
        ),
        compiler_params=pltpu.CompilerParams(
            dimension_semantics=("parallel", "arbitrary"),
            vmem_limit_bytes=vmem_limit,
        ),
    )(x_perm, w_packed)

    # Tiny epilogue: sum core partials, take the (r == r') diagonal, add bias.
    z = partials.sum(axis=0).reshape(B, 8, 8, O)          # z[b, r, r', o]
    y = jnp.diagonal(z, axis1=1, axis2=2).sum(axis=-1)    # (B, O)
    y = y + bias[None, :]
    return y.astype(out_dtype)


def _reference(attn_data, weight_t, bias):
    x2d = attn_data.reshape(attn_data.shape[0], -1)
    return jnp.dot(x2d, weight_t, precision=jax.lax.Precision.HIGHEST) + bias[None, :]


# ----------------------------------------------------------------------------
# Example / self-test
# ----------------------------------------------------------------------------
if __name__ == "__main__":
    key = jax.random.PRNGKey(0)

    def _make(klist, B, L, H, O):
        k_x, k_w, k_b = klist
        F = L * H
        x = jax.random.normal(k_x, (B, L, H), dtype=jnp.float32)
        w = jax.random.normal(k_w, (F, O), dtype=jnp.float32) / jnp.sqrt(F)
        b = jax.random.normal(k_b, (O,), dtype=jnp.float32) * 0.01
        return x, w, b

    # 1) Production-like shape (single-shot path):
    #    batch=2, hidden=32, encoder_length=8, time_interval=2, output=16.
    keys = jax.random.split(key, 9)
    x1, w1, b1 = _make(keys[0:3], B=2, L=8 * 2, H=32, O=16)
    xdict = {"attn_data": x1}
    out1 = jax.block_until_ready(collapse_mlp_output(xdict["attn_data"], w1, b1))
    xdict["output_data"] = out1
    assert out1.shape == (2, 16)
    assert jnp.allclose(out1, _reference(x1, w1, b1), atol=1e-3, rtol=1e-3)

    # 2) Larger F, forced onto the packed tiled-reduction path (multi-step,
    #    2-way parallel split): encoder_length=32, time_interval=8, hidden=32.
    x2, w2, b2 = _make(keys[3:6], B=2, L=32 * 8, H=32, O=16)      # F = 8192
    out2 = jax.block_until_ready(
        collapse_mlp_output(x2, w2, b2,
                            single_shot_max_bytes=0,
                            tile_budget_bytes=256 * 1152))        # gt = 256
    assert jnp.allclose(out2, _reference(x2, w2, b2), atol=1e-3, rtol=1e-3)

    # 3) Ragged F (not a multiple of 1024), forced reduction path -> padding.
    x3, w3, b3 = _make(keys[6:9], B=2, L=10 * 4, H=13, O=16)      # F = 520
    out3 = jax.block_until_ready(
        collapse_mlp_output(x3, w3, b3, single_shot_max_bytes=0))
    assert jnp.allclose(out3, _reference(x3, w3, b3), atol=1e-3, rtol=1e-3)

    print("KERNEL_OK")
</pallas_src>

<mosaic_0001>
module attributes {stable_mosaic.version = 11 : i64} {
  func.func @_single_shot_kernel(%arg0: memref<2x512xf32, #tpu.memory_space<vmem>>, %arg1: memref<512x16xf32, #tpu.memory_space<vmem>>, %arg2: memref<1x16xf32, #tpu.memory_space<vmem>>, %arg3: memref<2x16xf32, #tpu.memory_space<vmem>>) attributes {dimension_semantics = [], scalar_prefetch = 0 : i64, scratch_operands = 0 : i64, tpu.core_type = #tpu.core_type<tc>} {
    %c0 = arith.constant 0 : index
    %c0_0 = arith.constant 0 : index
    %0 = vector.load %arg0[%c0, %c0_0] : memref<2x512xf32, #tpu.memory_space<vmem>>, vector<2x512xf32>
    %c0_1 = arith.constant 0 : index
    %c0_2 = arith.constant 0 : index
    %1 = vector.load %arg1[%c0_1, %c0_2] : memref<512x16xf32, #tpu.memory_space<vmem>>, vector<512x16xf32>
    %cst = arith.constant dense<0.000000e+00> : vector<2x16xf32>
    %2 = tpu.matmul %0, %1, %cst {dimension_numbers = #tpu.dot_dimension_numbers<[1], [0], [0], [1], [0, 0, 1, 1], [], []>} : vector<2x512xf32>, vector<512x16xf32>, vector<2x16xf32> -> vector<2x16xf32>
    %c0_3 = arith.constant 0 : index
    %c0_4 = arith.constant 0 : index
    %3 = vector.load %arg2[%c0_3, %c0_4] : memref<1x16xf32, #tpu.memory_space<vmem>>, vector<1x16xf32>
    %4 = vector.broadcast %3 : vector<1x16xf32> to vector<2x16xf32>
    %5 = arith.addf %2, %4 : vector<2x16xf32>
    %c0_5 = arith.constant 0 : index
    %c0_6 = arith.constant 0 : index
    %6 = vector.load %arg3[%c0_5, %c0_6] : memref<2x16xf32, #tpu.memory_space<vmem>>, vector<2x16xf32>
    tpu.vector_store %arg3[%c0_5, %c0_6], %5 {strides = array<i32>} : memref<2x16xf32, #tpu.memory_space<vmem>>, vector<2x16xf32>,
    return
  }
}

</mosaic_0001>

<llo_original>
// kernel: collapse_mlp_output.1
$region0: #{collapse_mlp_output.1}
  #allocation0 [shape = 'u32[]', space=smem, size = 0x4, offset = 0x4, fixed_abs, tag = 'smem constant byte address 0x4 - core index']
  #allocation1 [shape = 'u32[144,128]{1,0:T(1,128)}', space=vmem, size = 0x12000, scoped, tag = 'internal scratch']
  %s0 = inlined_call_operand.vmem [shape: f32[2,512], index: 0, kind: input, shape index: {}]
  %s1 = inlined_call_operand.vmem [shape: f32[512,16], index: 1, kind: input, shape index: {}]
  %s2 = inlined_call_operand.vmem [shape: f32[1,16], index: 2, kind: input, shape index: {}]
  %s3 = inlined_call_operand.hbm [shape: f32[2,16], index: 3, kind: output, shape index: {}]
  %s4 = sld [smem:[#allocation0]]
  $region22: #{collapse_mlp_output.1} parent=0
    _
  %s6 = ssub.s32 1, %s4
  %s7 = scalar_select 0, %s6, %s4
  $region1: #{collapse_mlp_output.1} parent=0
    #allocation2 [shape = 'u8[1024]{0}', space=vmem, size = 0x400, scoped, tag = 'output window, operand 0, single buffered']
    #allocation3 [shape = 's32[1]{0}', space=sflag, size = 0x4, scoped, tag = 'scoped memory for collapse_mlp_output.1']
    %8 = vsyncpa [#allocation3], 0
    // Predicated region
    $region2: #{collapse_mlp_output.1} parent=1 // pred_check
      _
    $region3: #{collapse_mlp_output.1} parent=1 // pred_check_branch
      %10 = sbr.rel (0) target = $region5
    $region4: #{collapse_mlp_output.1} parent=1 // pred_region
      _
    $region5: #{collapse_mlp_output.1} parent=1 // pred_fallthru
      _
    // Predicated region
    $region6: #{collapse_mlp_output.1} parent=1 // pred_check
      _
    $region7: #{collapse_mlp_output.1} parent=1 // pred_check_branch
      %12 = sbr.rel (0) target = $region9
    $region8: #{collapse_mlp_output.1} parent=1 // pred_region
      _
    $region9: #{collapse_mlp_output.1} parent=1 // pred_fallthru
      _
    // Predicated region
    $region10: #{collapse_mlp_output.1} parent=1 // pred_check
      _
    $region11: #{collapse_mlp_output.1} parent=1 // pred_check_branch
      %14 = sbr.rel (0) target = $region13
    $region12: #{collapse_mlp_output.1} parent=1 // pred_region
      _
    $region13: #{collapse_mlp_output.1} parent=1 // pred_fallthru
      _
    %v15 = vld [vmem:[%s0] sm:$0xff]
    %v16 = vld [vmem:[%s1] sm:$0xff]
    %v17 = vld [vmem:[%s1 + $0x8] sm:$0xff]
    %v18 = vld [vmem:[%s1 + $0x10] sm:$0xff]
    %v19 = vld [vmem:[%s1 + $0x18] sm:$0xff]
    %v20 = vld [vmem:[%s1 + $0x20] sm:$0xff]
    %v21 = vld [vmem:[%s1 + $0x28] sm:$0xff]
    %v22 = vld [vmem:[%s1 + $0x30] sm:$0xff]
    %v23 = vld [vmem:[%s1 + $0x38] sm:$0xff]
    %v24 = vld [vmem:[%s1 + $0x40] sm:$0xff]
    %v25 = vld [vmem:[%s1 + $0x48] sm:$0xff]
    %v26 = vld [vmem:[%s1 + $0x50] sm:$0xff]
    %v27 = vld [vmem:[%s1 + $0x58] sm:$0xff]
    %v28 = vld [vmem:[%s1 + $0x60] sm:$0xff]
    %v29 = vld [vmem:[%s1 + $0x68] sm:$0xff]
    %v30 = vld [vmem:[%s1 + $0x70] sm:$0xff]
    %v31 = vld [vmem:[%s1 + $0x78] sm:$0xff]
    %v32 = vld [vmem:[%s1 + $0x80] sm:$0xff]
    %v33 = vld [vmem:[%s1 + $0x88] sm:$0xff]
    %v34 = vld [vmem:[%s1 + $0x90] sm:$0xff]
    %v35 = vld [vmem:[%s1 + $0x98] sm:$0xff]
    %v36 = vld [vmem:[%s1 + $0xa0] sm:$0xff]
    %v37 = vld [vmem:[%s1 + $0xa8] sm:$0xff]
    %v38 = vld [vmem:[%s1 + $0xb0] sm:$0xff]
    %v39 = vld [vmem:[%s1 + $0xb8] sm:$0xff]
    %v40 = vld [vmem:[%s1 + $0xc0] sm:$0xff]
    %v41 = vld [vmem:[%s1 + $0xc8] sm:$0xff]
    %v42 = vld [vmem:[%s1 + $0xd0] sm:$0xff]
    %v43 = vld [vmem:[%s1 + $0xd8] sm:$0xff]
    %v44 = vld [vmem:[%s1 + $0xe0] sm:$0xff]
    %v45 = vld [vmem:[%s1 + $0xe8] sm:$0xff]
    %v46 = vld [vmem:[%s1 + $0xf0] sm:$0xff]
    %v47 = vld [vmem:[%s1 + $0xf8] sm:$0xff]
    %v48 = vld [vmem:[%s1 + $0x100] sm:$0xff]
    %v49 = vld [vmem:[%s1 + $0x108] sm:$0xff]
    %v50 = vld [vmem:[%s1 + $0x110] sm:$0xff]
    %v51 = vld [vmem:[%s1 + $0x118] sm:$0xff]
    %v52 = vld [vmem:[%s1 + $0x120] sm:$0xff]
    %v53 = vld [vmem:[%s1 + $0x128] sm:$0xff]
    %v54 = vld [vmem:[%s1 + $0x130] sm:$0xff]
    %v55 = vld [vmem:[%s1 + $0x138] sm:$0xff]
    %v56 = vld [vmem:[%s1 + $0x140] sm:$0xff]
    %v57 = vld [vmem:[%s1 + $0x148] sm:$0xff]
    %v58 = vld [vmem:[%s1 + $0x150] sm:$0xff]
    %v59 = vld [vmem:[%s1 + $0x158] sm:$0xff]
    %v60 = vld [vmem:[%s1 + $0x160] sm:$0xff]
    %v61 = vld [vmem:[%s1 + $0x168] sm:$0xff]
    %v62 = vld [vmem:[%s1 + $0x170] sm:$0xff]
    %v63 = vld [vmem:[%s1 + $0x178] sm:$0xff]
    %v64 = vld [vmem:[%s1 + $0x180] sm:$0xff]
    %v65 = vld [vmem:[%s1 + $0x188] sm:$0xff]
    %v66 = vld [vmem:[%s1 + $0x190] sm:$0xff]
    %v67 = vld [vmem:[%s1 + $0x198] sm:$0xff]
    %v68 = vld [vmem:[%s1 + $0x1a0] sm:$0xff]
    %v69 = vld [vmem:[%s1 + $0x1a8] sm:$0xff]
    %v70 = vld [vmem:[%s1 + $0x1b0] sm:$0xff]
    %v71 = vld [vmem:[%s1 + $0x1b8] sm:$0xff]
    %v72 = vld [vmem:[%s1 + $0x1c0] sm:$0xff]
    %v73 = vld [vmem:[%s1 + $0x1c8] sm:$0xff]
    %v74 = vld [vmem:[%s1 + $0x1d0] sm:$0xff]
    %v75 = vld [vmem:[%s1 + $0x1d8] sm:$0xff]
    %v76 = vld [vmem:[%s1 + $0x1e0] sm:$0xff]
    %v77 = vld [vmem:[%s1 + $0x1e8] sm:$0xff]
    %v78 = vld [vmem:[%s1 + $0x1f0] sm:$0xff]
    %v79 = vld [vmem:[%s1 + $0x1f8] sm:$0xff]
    %v80 = vld [vmem:[%s2] sm:$0x1]
    %v82 = vlaneseq
    %v83 = vshrl.u32 %v82, 7
    %v84 = vsub.s32 0, %v83
    %v85 = vrot.slane %v80, %v84
    %v88 = vcombine.high %v15, %v15
    %v90 = vunpack.c.l.s4 1983009808
    %v91 = vunpack.c.0.s8 %v90
    %v92 = vlaneseq
    %v93 = vshrl.u32 %v92, 7
    %v94 = vsub.s32 %v91, %v93
    %v95 = vrot.slane %v15, %v94
    %v97 = vunpack.c.l.s4 1983009808
    %v98 = vunpack.c.0.s8 %v97
    %v99 = vlaneseq
    %v100 = vshrl.u32 %v99, 7
    %v101 = vsub.s32 %v98, %v100
    %v102 = vrot.slane %v88, %v101
    %v103 = vcombine.high %v95, %v95
    %v104 = vcombine.high %v102, %v102
    %109 = vmatprep.subr.mxu0 0.0
    %110 = vmatpush1.msra.mxu0 %v31
    %111 = vmatprep.subr.mxu0 0.0
    %112 = vmatpush1.msra.mxu0 %v30
    %113 = vmatprep.subr.mxu0 0.0
    %114 = vmatpush1.msra.mxu0 %v29
    %115 = vmatprep.subr.mxu0 0.0
    %116 = vmatpush1.msra.mxu0 %v28
    %117 = vmatprep.subr.mxu0 0.0
    %118 = vmatpush1.msra.mxu0 %v27
    %119 = vmatprep.subr.mxu0 0.0
    %120 = vmatpush1.msra.mxu0 %v26
    %121 = vmatprep.subr.mxu0 0.0
    %122 = vmatpush1.msra.mxu0 %v25
    %123 = vmatprep.subr.mxu0 0.0
    %124 = vmatpush1.msra.mxu0 %v24
    %125 = vmatprep.subr.mxu0 0.0
    %126 = vmatpush1.msra.mxu0 %v23
    %127 = vmatprep.subr.mxu0 0.0
    %128 = vmatpush1.msra.mxu0 %v22
    %129 = vmatprep.subr.mxu0 0.0
    %130 = vmatpush1.msra.mxu0 %v21
    %131 = vmatprep.subr.mxu0 0.0
    %132 = vmatpush1.msra.mxu0 %v20
    %133 = vmatprep.subr.mxu0 0.0
    %134 = vmatpush1.msra.mxu0 %v19
    %135 = vmatprep.subr.mxu0 0.0
    %136 = vmatpush1.msra.mxu0 %v18
    %137 = vmatprep.subr.mxu0 0.0
    %138 = vmatpush1.msra.mxu0 %v17
    %139 = vmatprep.subr.mxu0 0.0
    %140 = vmatpush1.msra.mxu0 %v16
    %141 = vmatprep.subr.mxu0 0.0
    %142 = vmatpush2.msra.mxu0 %v47
    %143 = vmatprep.subr.mxu0 0.0
    %144 = vmatpush2.msra.mxu0 %v46
    %145 = vmatprep.subr.mxu0 0.0
    %146 = vmatpush2.msra.mxu0 %v45
    %147 = vmatprep.subr.mxu0 0.0
    %148 = vmatpush2.msra.mxu0 %v44
    %149 = vmatprep.subr.mxu0 0.0
    %150 = vmatpush2.msra.mxu0 %v43
    %151 = vmatprep.subr.mxu0 0.0
    %152 = vmatpush2.msra.mxu0 %v42
    %153 = vmatprep.subr.mxu0 0.0
    %154 = vmatpush2.msra.mxu0 %v41
    %155 = vmatprep.subr.mxu0 0.0
    %156 = vmatpush2.msra.mxu0 %v40
    %157 = vmatprep.subr.mxu0 0.0
    %158 = vmatpush2.msra.mxu0 %v39
    %159 = vmatprep.subr.mxu0 0.0
    %160 = vmatpush2.msra.mxu0 %v38
    %161 = vmatprep.subr.mxu0 0.0
    %162 = vmatpush2.msra.mxu0 %v37
    %163 = vmatprep.subr.mxu0 0.0
    %164 = vmatpush2.msra.mxu0 %v36
    %165 = vmatprep.subr.mxu0 0.0
    %166 = vmatpush2.msra.mxu0 %v35
    %167 = vmatprep.subr.mxu0 0.0
    %168 = vmatpush2.msra.mxu0 %v34
    %169 = vmatprep.subr.mxu0 0.0
    %170 = vmatpush2.msra.mxu0 %v33
    %171 = vmatprep.subr.mxu0 0.0
    %172 = vmatpush2.msra.mxu0 %v32
    %173 = vmatprep.mubr.f32.mxu0 %v103
    %174 = vmatmul.mubr.f32.gmra.mxu0 %v95
    %v175 = vpop.f32.mrf.mxu0
    %v176 = vadd.f32 %v85, %v175
    %v177 = vpop.f32.mrf.mxu0
    %178 = vdwg.mxu0
    %179 = vmatprep.subr.mxu0 0.0
    %180 = vmatpush1.msra.mxu0 %v63
    %181 = vmatprep.subr.mxu0 0.0
    %182 = vmatpush1.msra.mxu0 %v62
    %183 = vmatprep.subr.mxu0 0.0
    %184 = vmatpush1.msra.mxu0 %v61
    %185 = vmatprep.subr.mxu0 0.0
    %186 = vmatpush1.msra.mxu0 %v60
    %187 = vmatprep.subr.mxu0 0.0
    %188 = vmatpush1.msra.mxu0 %v59
    %189 = vmatprep.subr.mxu0 0.0
    %190 = vmatpush1.msra.mxu0 %v58
    %191 = vmatprep.subr.mxu0 0.0
    %192 = vmatpush1.msra.mxu0 %v57
    %193 = vmatprep.subr.mxu0 0.0
    %194 = vmatpush1.msra.mxu0 %v56
    %195 = vmatprep.subr.mxu0 0.0
    %196 = vmatpush1.msra.mxu0 %v55
    %197 = vmatprep.subr.mxu0 0.0
    %198 = vmatpush1.msra.mxu0 %v54
    %199 = vmatprep.subr.mxu0 0.0
    %200 = vmatpush1.msra.mxu0 %v53
    %201 = vmatprep.subr.mxu0 0.0
    %202 = vmatpush1.msra.mxu0 %v52
    %203 = vmatprep.subr.mxu0 0.0
    %204 = vmatpush1.msra.mxu0 %v51
    %205 = vmatprep.subr.mxu0 0.0
    %206 = vmatpush1.msra.mxu0 %v50
    %207 = vmatprep.subr.mxu0 0.0
    %208 = vmatpush1.msra.mxu0 %v49
    %209 = vmatprep.subr.mxu0 0.0
    %210 = vmatpush1.msra.mxu0 %v48
    %211 = vmatprep.subr.mxu0 0.0
    %212 = vmatpush2.msra.mxu0 %v79
    %213 = vmatprep.subr.mxu0 0.0
    %214 = vmatpush2.msra.mxu0 %v78
    %215 = vmatprep.subr.mxu0 0.0
    %216 = vmatpush2.msra.mxu0 %v77
    %217 = vmatprep.subr.mxu0 0.0
    %218 = vmatpush2.msra.mxu0 %v76
    %219 = vmatprep.subr.mxu0 0.0
    %220 = vmatpush2.msra.mxu0 %v75
    %221 = vmatprep.subr.mxu0 0.0
    %222 = vmatpush2.msra.mxu0 %v74
    %223 = vmatprep.subr.mxu0 0.0
    %224 = vmatpush2.msra.mxu0 %v73
    %225 = vmatprep.subr.mxu0 0.0
    %226 = vmatpush2.msra.mxu0 %v72
    %227 = vmatprep.subr.mxu0 0.0
    %228 = vmatpush2.msra.mxu0 %v71
    %229 = vmatprep.subr.mxu0 0.0
    %230 = vmatpush2.msra.mxu0 %v70
    %231 = vmatprep.subr.mxu0 0.0
    %232 = vmatpush2.msra.mxu0 %v69
    %233 = vmatprep.subr.mxu0 0.0
    %234 = vmatpush2.msra.mxu0 %v68
    %235 = vmatprep.subr.mxu0 0.0
    %236 = vmatpush2.msra.mxu0 %v67
    %237 = vmatprep.subr.mxu0 0.0
    %238 = vmatpush2.msra.mxu0 %v66
    %239 = vmatprep.subr.mxu0 0.0
    %240 = vmatpush2.msra.mxu0 %v65
    %241 = vmatprep.subr.mxu0 0.0
    %242 = vmatpush2.msra.mxu0 %v64
    %243 = vmatprep.mubr.f32.mxu0 %v104
    %244 = vmatmul.mubr.f32.gmra.mxu0 %v102
    %v245 = vpop.f32.mrf.mxu0
    %v246 = vadd.f32 %v176, %v245
    %v247 = vpop.f32.mrf.mxu0
    %248 = vdwg.mxu0
    %vm249 = vcmask 123904
    %250 = vst.msk [vmem:[#allocation2] sm:$0x3] %vm249, %v246
    // Predicated region
    $region14: #{collapse_mlp_output.1} parent=1 // pred_check
      _
    $region15: #{collapse_mlp_output.1} parent=1 // pred_check_branch
      %252 = sbr.rel (0) target = $region17
    $region16: #{collapse_mlp_output.1} parent=1 // pred_region
      %s254 = ssub.s32 32, 32
      %255 = vsyncadd [#allocation3], %s254
      %s257 = sshll.u32 [#allocation2], 4
      %s258 = int_to_ptr.vmem [resolvable:$true] %s257
      %260 = dma.vmem_to_hbm [thread:$0]  %s258, 32, %s3, [#allocation3]
    $region17: #{collapse_mlp_output.1} parent=1 // pred_fallthru
      _
    // Predicated region
    $region18: #{collapse_mlp_output.1} parent=1 // pred_check
      _
    $region19: #{collapse_mlp_output.1} parent=1 // pred_check_branch
      %262 = sbr.rel (0) target = $region21
    $region20: #{collapse_mlp_output.1} parent=1 // pred_region
      %263 = dma.done [#allocation3], 32
    $region21: #{collapse_mlp_output.1} parent=1 // pred_fallthru
      _
    %264 = vsyncpa [#allocation3], 1

</llo_original>
